<compile_context>
chip_gen: v6e
topology: v6e:2x2x1
jax: 0.10.0
libtpu: 0.0.40
codegen_flags: <defaults>
</compile_context>

<pallas_src>
import jax
import jax.numpy as jnp
from jax.experimental import pallas as pl
from jax.experimental.pallas import tpu as pltpu

LANE = 128
SUBLANE = 8


def _round_up(x, m):
    return ((x + m - 1) // m) * m


# ----------------------------- kernel ---------------------------------------

def actor_kernel(state_ref, w1_ref, b1_ref, w2_ref, b2_ref, w3_ref, b3_ref,
                 out_ref):
    # fc1 + relu  (MXU matmul, f32 accumulate; VPU max)
    x = jnp.dot(state_ref[...], w1_ref[...],
                preferred_element_type=jnp.float32) + b1_ref[...]
    x = jnp.maximum(x, 0.0)
    # fc2 + relu
    h = jnp.dot(x, w2_ref[...],
                preferred_element_type=jnp.float32) + b2_ref[...]
    h = jnp.maximum(h, 0.0)
    # output head (lane-padded to 128 columns) + tanh (EUP slot)
    out_ref[...] = jnp.tanh(
        jnp.dot(h, w3_ref[...], preferred_element_type=jnp.float32)
        + b3_ref[...])


# ----------------------------- wrapper ---------------------------------------

def pad_params_for_kernel(params):
    """Zero-pad W1 rows to a 128 multiple and the output head to 128 lanes."""
    w1, b1, w2, b2, w3, b3 = params
    k, _ = w1.shape
    _, n_act = w3.shape
    k_pad = _round_up(k, LANE)
    n_pad = _round_up(n_act, LANE)
    w1p = jnp.pad(w1, ((0, k_pad - k), (0, 0)))
    w3p = jnp.pad(w3, ((0, 0), (0, n_pad - n_act)))
    b3p = jnp.pad(b3, ((0, 0), (0, n_pad - n_act)))
    return (w1p, b1, w2, b2, w3p, b3p)


def actor_forward(state, padded_params, n_actions, tile_b=None):
    """state: (B, input_dim) f32 -> (B, n_actions) f32."""
    w1, b1, w2, b2, w3, b3 = padded_params
    B, K = state.shape
    k_pad, fc1 = w1.shape
    fc2, n_pad = w3.shape

    if tile_b is None:
        # Sublane-aligned; big enough to amortize the ~0.35us/step pipeline
        # overhead, small enough that double-buffered (tile_b, k/256/128/128)
        # f32 activation tiles stay far below even v7x's 64 MiB VMEM.
        tile_b = min(512, _round_up(B, SUBLANE))
    b_pad = _round_up(B, tile_b)

    # Host-side zero padding: batch rows to a tile multiple, K to 128 lanes.
    state_p = jnp.pad(state, ((0, b_pad - B), (0, k_pad - K)))

    grid = (b_pad // tile_b,)
    const = lambda i: (0, 0)

    flops = 2 * b_pad * (k_pad * fc1 + fc1 * fc2 + fc2 * n_pad)
    bytes_accessed = 4 * (state_p.size + w1.size + b1.size + w2.size
                          + b2.size + w3.size + b3.size + b_pad * n_pad)

    out = pl.pallas_call(
        actor_kernel,
        out_shape=jax.ShapeDtypeStruct((b_pad, n_pad), jnp.float32),
        grid=grid,
        in_specs=[
            pl.BlockSpec((tile_b, k_pad), lambda i: (i, 0)),  # state (pipelined)
            pl.BlockSpec((k_pad, fc1), const),                # W1 (VMEM-resident)
            pl.BlockSpec((1, fc1), const),                    # b1
            pl.BlockSpec((fc1, fc2), const),                  # W2
            pl.BlockSpec((1, fc2), const),                    # b2
            pl.BlockSpec((fc2, n_pad), const),                # W3 (lane-padded)
            pl.BlockSpec((1, n_pad), const),                  # b3 (lane-padded)
        ],
        out_specs=pl.BlockSpec((tile_b, n_pad), lambda i: (i, 0)),
        compiler_params=pltpu.CompilerParams(
            dimension_semantics=("parallel",)),
        cost_estimate=pl.CostEstimate(
            flops=flops,
            transcendentals=b_pad * n_pad,
            bytes_accessed=bytes_accessed),
    )(state_p, w1, b1, w2, b2, w3, b3)

    return out[:B, :n_actions]


# ----------------------------- init & reference ------------------------------

def kaiming_normal(key, fan_in, fan_out):
    # nn.init.kaiming_normal_ (nonlinearity='relu', mode='fan_in'):
    # std = sqrt(2 / fan_in); stored transposed as (in, out) so the kernel
    # computes x @ W directly.
    std = jnp.sqrt(2.0 / fan_in)
    return std * jax.random.normal(key, (fan_in, fan_out), dtype=jnp.float32)


def init_params(key, input_dim, fc1_dims=256, fc2_dims=128, n_actions=2):
    k1, k2, k3 = jax.random.split(key, 3)
    w1 = kaiming_normal(k1, input_dim, fc1_dims)
    b1 = jnp.zeros((1, fc1_dims), jnp.float32)
    w2 = kaiming_normal(k2, fc1_dims, fc2_dims)
    b2 = jnp.zeros((1, fc2_dims), jnp.float32)
    w3 = kaiming_normal(k3, fc2_dims, n_actions)
    b3 = jnp.zeros((1, n_actions), jnp.float32)
    return (w1, b1, w2, b2, w3, b3)


def actor_reference(state, params):
    """Plain-JAX reference matching the PyTorch forward exactly."""
    w1, b1, w2, b2, w3, b3 = params
    x = jnp.maximum(state @ w1 + b1, 0.0)
    x = jnp.maximum(x @ w2 + b2, 0.0)
    return jnp.tanh(x @ w3 + b3)


# ----------------------------- demo ------------------------------------------

if __name__ == "__main__":
    key = jax.random.PRNGKey(0)
    k_params, k_state, k_state2 = jax.random.split(key, 3)

    batch = 8
    input_dim = 32        # input_dims = (32,)
    n_actions = 2

    params = init_params(k_params, input_dim, fc1_dims=256, fc2_dims=128,
                         n_actions=n_actions)
    padded_params = pad_params_for_kernel(params)

    # Small-batch correctness check (single grid step).
    state = jax.random.normal(k_state, (batch, input_dim), dtype=jnp.float32)
    out = jax.block_until_ready(actor_forward(state, padded_params, n_actions))
    ref = actor_reference(state, params)
    assert out.shape == (batch, n_actions)
    assert jnp.allclose(out, ref, atol=1e-4, rtol=1e-4), (out, ref)

    # Larger, non-tile-multiple batch to exercise the multi-step pipelined /
    # megacore-parallel grid path.
    big_batch = 300
    state2 = jax.random.normal(k_state2, (big_batch, input_dim),
                               dtype=jnp.float32)
    out2 = jax.block_until_ready(
        actor_forward(state2, padded_params, n_actions, tile_b=128))
    ref2 = actor_reference(state2, params)
    assert out2.shape == (big_batch, n_actions)
    assert jnp.allclose(out2, ref2, atol=1e-4, rtol=1e-4)

    print("KERNEL_OK")
</pallas_src>

<mosaic_0001>
module attributes {stable_mosaic.version = 11 : i64} {
  func.func @actor_kernel(%arg0: i32, %arg1: memref<8x128xf32, #tpu.memory_space<vmem>>, %arg2: memref<128x256xf32, #tpu.memory_space<vmem>>, %arg3: memref<1x256xf32, #tpu.memory_space<vmem>>, %arg4: memref<256x128xf32, #tpu.memory_space<vmem>>, %arg5: memref<1x128xf32, #tpu.memory_space<vmem>>, %arg6: memref<128x128xf32, #tpu.memory_space<vmem>>, %arg7: memref<1x128xf32, #tpu.memory_space<vmem>>, %arg8: memref<8x128xf32, #tpu.memory_space<vmem>>) attributes {dimension_semantics = [#tpu.dimension_semantics<parallel>], iteration_bounds = array<i64: 1>, scalar_prefetch = 0 : i64, scratch_operands = 0 : i64, tpu.core_type = #tpu.core_type<tc>, window_params = [{transform_indices = @transform_0, window_bounds = array<i64: 8, 128>}, {pipeline_mode = #tpu.pipeline_mode<synchronous>, transform_indices = @transform_1, window_bounds = array<i64: 128, 256>}, {pipeline_mode = #tpu.pipeline_mode<synchronous>, transform_indices = @transform_2, window_bounds = array<i64: 1, 256>}, {pipeline_mode = #tpu.pipeline_mode<synchronous>, transform_indices = @transform_3, window_bounds = array<i64: 256, 128>}, {pipeline_mode = #tpu.pipeline_mode<synchronous>, transform_indices = @transform_4, window_bounds = array<i64: 1, 128>}, {pipeline_mode = #tpu.pipeline_mode<synchronous>, transform_indices = @transform_5, window_bounds = array<i64: 128, 128>}, {pipeline_mode = #tpu.pipeline_mode<synchronous>, transform_indices = @transform_6, window_bounds = array<i64: 1, 128>}, {transform_indices = @transform_7, window_bounds = array<i64: 8, 128>}]} {
    %c0 = arith.constant 0 : index
    %c0_0 = arith.constant 0 : index
    %0 = vector.load %arg1[%c0, %c0_0] : memref<8x128xf32, #tpu.memory_space<vmem>>, vector<8x128xf32>
    %c0_1 = arith.constant 0 : index
    %c0_2 = arith.constant 0 : index
    %1 = vector.load %arg2[%c0_1, %c0_2] : memref<128x256xf32, #tpu.memory_space<vmem>>, vector<128x256xf32>
    %cst = arith.constant dense<0.000000e+00> : vector<8x256xf32>
    %2 = tpu.matmul %0, %1, %cst {dimension_numbers = #tpu.dot_dimension_numbers<[1], [0], [0], [1], [0, 0, 1, 1], [], []>} : vector<8x128xf32>, vector<128x256xf32>, vector<8x256xf32> -> vector<8x256xf32>
    %c0_3 = arith.constant 0 : index
    %c0_4 = arith.constant 0 : index
    %3 = vector.load %arg3[%c0_3, %c0_4] : memref<1x256xf32, #tpu.memory_space<vmem>>, vector<1x256xf32>
    %4 = vector.broadcast %3 : vector<1x256xf32> to vector<8x256xf32>
    %5 = arith.addf %2, %4 : vector<8x256xf32>
    %cst_5 = arith.constant 0.000000e+00 : f32
    %6 = vector.broadcast %cst_5 : f32 to vector<8x256xf32>
    %7 = arith.maximumf %5, %6 : vector<8x256xf32>
    %c0_6 = arith.constant 0 : index
    %c0_7 = arith.constant 0 : index
    %8 = vector.load %arg4[%c0_6, %c0_7] : memref<256x128xf32, #tpu.memory_space<vmem>>, vector<256x128xf32>
    %cst_8 = arith.constant dense<0.000000e+00> : vector<8x128xf32>
    %9 = tpu.matmul %7, %8, %cst_8 {dimension_numbers = #tpu.dot_dimension_numbers<[1], [0], [0], [1], [0, 0, 1, 1], [], []>} : vector<8x256xf32>, vector<256x128xf32>, vector<8x128xf32> -> vector<8x128xf32>
    %c0_9 = arith.constant 0 : index
    %c0_10 = arith.constant 0 : index
    %10 = vector.load %arg5[%c0_9, %c0_10] : memref<1x128xf32, #tpu.memory_space<vmem>>, vector<1x128xf32>
    %11 = vector.broadcast %10 : vector<1x128xf32> to vector<8x128xf32>
    %12 = arith.addf %9, %11 : vector<8x128xf32>
    %cst_11 = arith.constant 0.000000e+00 : f32
    %13 = vector.broadcast %cst_11 : f32 to vector<8x128xf32>
    %14 = arith.maximumf %12, %13 : vector<8x128xf32>
    %c0_12 = arith.constant 0 : index
    %c0_13 = arith.constant 0 : index
    %15 = vector.load %arg6[%c0_12, %c0_13] : memref<128x128xf32, #tpu.memory_space<vmem>>, vector<128x128xf32>
    %cst_14 = arith.constant dense<0.000000e+00> : vector<8x128xf32>
    %16 = tpu.matmul %14, %15, %cst_14 {dimension_numbers = #tpu.dot_dimension_numbers<[1], [0], [0], [1], [0, 0, 1, 1], [], []>} : vector<8x128xf32>, vector<128x128xf32>, vector<8x128xf32> -> vector<8x128xf32>
    %c0_15 = arith.constant 0 : index
    %c0_16 = arith.constant 0 : index
    %17 = vector.load %arg7[%c0_15, %c0_16] : memref<1x128xf32, #tpu.memory_space<vmem>>, vector<1x128xf32>
    %18 = vector.broadcast %17 : vector<1x128xf32> to vector<8x128xf32>
    %19 = arith.addf %16, %18 : vector<8x128xf32>
    %20 = math.tanh %19 : vector<8x128xf32>
    %c0_17 = arith.constant 0 : index
    %c0_18 = arith.constant 0 : index
    %21 = vector.load %arg8[%c0_17, %c0_18] : memref<8x128xf32, #tpu.memory_space<vmem>>, vector<8x128xf32>
    tpu.vector_store %arg8[%c0_17, %c0_18], %20 {strides = array<i32>} : memref<8x128xf32, #tpu.memory_space<vmem>>, vector<8x128xf32>,
    return
  }
  func.func @transform_0(%arg0: i32) -> (i32, i32) {
    %c0_i32 = arith.constant 0 : i32
    %c0_i32_0 = arith.constant 0 : i32
    return %arg0, %c0_i32 : i32, i32
  }
  func.func @transform_1(%arg0: i32) -> (i32, i32) {
    %c0_i32 = arith.constant 0 : i32
    %c0_i32_0 = arith.constant 0 : i32
    %c0_i32_1 = arith.constant 0 : i32
    return %c0_i32, %c0_i32_0 : i32, i32
  }
  func.func @transform_2(%arg0: i32) -> (i32, i32) {
    %c0_i32 = arith.constant 0 : i32
    %c0_i32_0 = arith.constant 0 : i32
    %c0_i32_1 = arith.constant 0 : i32
    return %c0_i32, %c0_i32_0 : i32, i32
  }
  func.func @transform_3(%arg0: i32) -> (i32, i32) {
    %c0_i32 = arith.constant 0 : i32
    %c0_i32_0 = arith.constant 0 : i32
    %c0_i32_1 = arith.constant 0 : i32
    return %c0_i32, %c0_i32_0 : i32, i32
  }
  func.func @transform_4(%arg0: i32) -> (i32, i32) {
    %c0_i32 = arith.constant 0 : i32
    %c0_i32_0 = arith.constant 0 : i32
    %c0_i32_1 = arith.constant 0 : i32
    return %c0_i32, %c0_i32_0 : i32, i32
  }
  func.func @transform_5(%arg0: i32) -> (i32, i32) {
    %c0_i32 = arith.constant 0 : i32
    %c0_i32_0 = arith.constant 0 : i32
    %c0_i32_1 = arith.constant 0 : i32
    return %c0_i32, %c0_i32_0 : i32, i32
  }
  func.func @transform_6(%arg0: i32) -> (i32, i32) {
    %c0_i32 = arith.constant 0 : i32
    %c0_i32_0 = arith.constant 0 : i32
    %c0_i32_1 = arith.constant 0 : i32
    return %c0_i32, %c0_i32_0 : i32, i32
  }
  func.func @transform_7(%arg0: i32) -> (i32, i32) {
    %c0_i32 = arith.constant 0 : i32
    %c0_i32_0 = arith.constant 0 : i32
    return %arg0, %c0_i32 : i32, i32
  }
}

</mosaic_0001>

<llo_original>
// kernel: tpu_custom_call.1
$region0: #{tpu_custom_call.1}
  #allocation0 [shape = 'u32[]', space=smem, size = 0x4, offset = 0x4, fixed_abs, tag = 'smem constant byte address 0x4 - core index']
  #allocation1 [shape = 'u32[144,128]{1,0:T(1,128)}', space=vmem, size = 0x12000, scoped, tag = 'internal scratch']
  %s0 = inlined_call_operand.hbm [shape: f32[8,128], index: 0, kind: input, shape index: {}]
  %s1 = inlined_call_operand.hbm [shape: f32[128,256], index: 1, kind: input, shape index: {}]
  %s2 = inlined_call_operand.vmem [shape: f32[1,256], index: 2, kind: input, shape index: {}]
  %s3 = inlined_call_operand.hbm [shape: f32[256,128], index: 3, kind: input, shape index: {}]
  %s4 = inlined_call_operand.vmem [shape: f32[1,128], index: 4, kind: input, shape index: {}]
  %s5 = inlined_call_operand.hbm [shape: f32[128,128], index: 5, kind: input, shape index: {}]
  %s6 = inlined_call_operand.vmem [shape: f32[1,128], index: 6, kind: input, shape index: {}]
  %s7 = inlined_call_operand.hbm [shape: f32[8,128], index: 7, kind: output, shape index: {}]
  %s8 = sld [smem:[#allocation0]]
  $region54: #{tpu_custom_call.1} parent=0
    _
  %s10 = ssub.s32 1, %s8
  %s11 = scalar_select 0, %s10, %s8
  $region1: #{tpu_custom_call.1} parent=0
    #allocation2 [shape = 'u8[4096]{0}', space=vmem, size = 0x1000, scoped, tag = 'input window, operand 0, single buffered']
    #allocation3 [shape = 's32[1]{0}', space=sflag, size = 0x4, scoped, tag = 'scoped memory for tpu_custom_call.1']
    #allocation4 [shape = 's32[1]{0}', space=sflag, size = 0x4, scoped, tag = 'scoped memory for tpu_custom_call.1']
    #allocation5 [shape = 'u8[131072]{0}', space=vmem, size = 0x20000, scoped, tag = 'input window, operand 1, single buffered']
    #allocation6 [shape = 's32[1]{0}', space=sflag, size = 0x4, scoped, tag = 'scoped memory for tpu_custom_call.1']
    #allocation7 [shape = 'u8[131072]{0}', space=vmem, size = 0x20000, scoped, tag = 'input window, operand 3, single buffered']
    #allocation8 [shape = 'u8[65536]{0}', space=vmem, size = 0x10000, scoped, tag = 'input window, operand 5, single buffered']
    #allocation9 [shape = 's32[1]{0}', space=sflag, size = 0x4, scoped, tag = 'scoped memory for tpu_custom_call.1']
    #allocation10 [shape = 'u8[4096]{0}', space=vmem, size = 0x1000, scoped, tag = 'output window, operand 0, single buffered']
    %12 = vsyncpa [#allocation3], 0
    %13 = vsyncpa [#allocation6], 0
    %14 = vsyncpa [#allocation9], 0
    %15 = vsyncpa [#allocation4], 0
    // Predicated region
    $region2: #{tpu_custom_call.1} parent=1 // pred_check
      _
    $region3: #{tpu_custom_call.1} parent=1 // pred_check_branch
      %17 = sbr.rel (0) target = $region5
    $region4: #{tpu_custom_call.1} parent=1 // pred_region
      %s19 = ssub.s32 128, 128
      %20 = vsyncadd [#allocation3], %s19
      %s22 = sshll.u32 [#allocation2], 4
      %s23 = int_to_ptr.vmem [resolvable:$true] %s22
      %25 = dma.hbm_to_vmem [thread:$0]  %s0, 128, %s23, [#allocation3]
    $region5: #{tpu_custom_call.1} parent=1 // pred_fallthru
      _
    // Predicated region
    $region6: #{tpu_custom_call.1} parent=1 // pred_check
      _
    $region7: #{tpu_custom_call.1} parent=1 // pred_check_branch
      %27 = sbr.rel (0) target = $region9
    $region8: #{tpu_custom_call.1} parent=1 // pred_region
      %s29 = ssub.s32 4096, 4096
      %30 = vsyncadd [#allocation6], %s29
      %s31 = sshll.u32 [#allocation5], 4
      %s32 = int_to_ptr.vmem [resolvable:$true] %s31
      %37 = dma.hbm_to_vmem [thread:$0]  %s1, 4096, %s32, [#allocation6], 256, 256, 16
    $region9: #{tpu_custom_call.1} parent=1 // pred_fallthru
      _
    // Predicated region
    $region10: #{tpu_custom_call.1} parent=1 // pred_check
      _
    $region11: #{tpu_custom_call.1} parent=1 // pred_check_branch
      %39 = sbr.rel (0) target = $region13
    $region12: #{tpu_custom_call.1} parent=1 // pred_region
      _
    $region13: #{tpu_custom_call.1} parent=1 // pred_fallthru
      _
    // Predicated region
    $region14: #{tpu_custom_call.1} parent=1 // pred_check
      _
    $region15: #{tpu_custom_call.1} parent=1 // pred_check_branch
      %41 = sbr.rel (0) target = $region17
    $region16: #{tpu_custom_call.1} parent=1 // pred_region
      %s43 = ssub.s32 4096, 4096
      %44 = vsyncadd [#allocation6], %s43
      %s45 = sshll.u32 [#allocation7], 4
      %s46 = int_to_ptr.vmem [resolvable:$true] %s45
      %51 = dma.hbm_to_vmem [thread:$0]  %s3, 4096, %s46, [#allocation6], 128, 128, 8
    $region17: #{tpu_custom_call.1} parent=1 // pred_fallthru
      _
    // Predicated region
    $region18: #{tpu_custom_call.1} parent=1 // pred_check
      _
    $region19: #{tpu_custom_call.1} parent=1 // pred_check_branch
      %53 = sbr.rel (0) target = $region21
    $region20: #{tpu_custom_call.1} parent=1 // pred_region
      _
    $region21: #{tpu_custom_call.1} parent=1 // pred_fallthru
      _
    // Predicated region
    $region22: #{tpu_custom_call.1} parent=1 // pred_check
      _
    $region23: #{tpu_custom_call.1} parent=1 // pred_check_branch
      %55 = sbr.rel (0) target = $region25
    $region24: #{tpu_custom_call.1} parent=1 // pred_region
      %s57 = ssub.s32 2048, 2048
      %58 = vsyncadd [#allocation9], %s57
      %s59 = sshll.u32 [#allocation8], 4
      %s60 = int_to_ptr.vmem [resolvable:$true] %s59
      %65 = dma.hbm_to_vmem [thread:$0]  %s5, 2048, %s60, [#allocation9], 128, 128, 8
    $region25: #{tpu_custom_call.1} parent=1 // pred_fallthru
      _
    // Predicated region
    $region26: #{tpu_custom_call.1} parent=1 // pred_check
      _
    $region27: #{tpu_custom_call.1} parent=1 // pred_check_branch
      %67 = sbr.rel (0) target = $region29
    $region28: #{tpu_custom_call.1} parent=1 // pred_region
      _
    $region29: #{tpu_custom_call.1} parent=1 // pred_fallthru
      _
    // Predicated region
    $region30: #{tpu_custom_call.1} parent=1 // pred_check
      _
    $region31: #{tpu_custom_call.1} parent=1 // pred_check_branch
      %69 = sbr.rel (0) target = $region33
    $region32: #{tpu_custom_call.1} parent=1 // pred_region
      %70 = dma.done [#allocation3], 128
    $region33: #{tpu_custom_call.1} parent=1 // pred_fallthru
      _
    // Predicated region
    $region34: #{tpu_custom_call.1} parent=1 // pred_check
      _
    $region35: #{tpu_custom_call.1} parent=1 // pred_check_branch
      %72 = sbr.rel (0) target = $region37
    $region36: #{tpu_custom_call.1} parent=1 // pred_region
      %73 = dma.done [#allocation6], 4096
    $region37: #{tpu_custom_call.1} parent=1 // pred_fallthru
      _
    // Predicated region
    $region38: #{tpu_custom_call.1} parent=1 // pred_check
      _
    $region39: #{tpu_custom_call.1} parent=1 // pred_check_branch
      %75 = sbr.rel (0) target = $region41
    $region40: #{tpu_custom_call.1} parent=1 // pred_region
      %76 = dma.done [#allocation6], 4096
    $region41: #{tpu_custom_call.1} parent=1 // pred_fallthru
      _
    // Predicated region
    $region42: #{tpu_custom_call.1} parent=1 // pred_check
      _
    $region43: #{tpu_custom_call.1} parent=1 // pred_check_branch
      %78 = sbr.rel (0) target = $region45
    $region44: #{tpu_custom_call.1} parent=1 // pred_region
      %79 = dma.done [#allocation9], 2048
    $region45: #{tpu_custom_call.1} parent=1 // pred_fallthru
      _
    %v80 = vld [vmem:[#allocation2] sm:$0xff]
    %v81 = vld [vmem:[#allocation5] sm:$0xff]
    %v82 = vld [vmem:[#allocation5 + $0x8] sm:$0xff]
    %v83 = vld [vmem:[#allocation5 + $0x10] sm:$0xff]
    %v84 = vld [vmem:[#allocation5 + $0x18] sm:$0xff]
    %v85 = vld [vmem:[#allocation5 + $0x20] sm:$0xff]
    %v86 = vld [vmem:[#allocation5 + $0x28] sm:$0xff]
    %v87 = vld [vmem:[#allocation5 + $0x30] sm:$0xff]
    %v88 = vld [vmem:[#allocation5 + $0x38] sm:$0xff]
    %v89 = vld [vmem:[#allocation5 + $0x40] sm:$0xff]
    %v90 = vld [vmem:[#allocation5 + $0x48] sm:$0xff]
    %v91 = vld [vmem:[#allocation5 + $0x50] sm:$0xff]
    %v92 = vld [vmem:[#allocation5 + $0x58] sm:$0xff]
    %v93 = vld [vmem:[#allocation5 + $0x60] sm:$0xff]
    %v94 = vld [vmem:[#allocation5 + $0x68] sm:$0xff]
    %v95 = vld [vmem:[#allocation5 + $0x70] sm:$0xff]
    %v96 = vld [vmem:[#allocation5 + $0x78] sm:$0xff]
    %v97 = vld [vmem:[#allocation5 + $0x80] sm:$0xff]
    %v98 = vld [vmem:[#allocation5 + $0x88] sm:$0xff]
    %v99 = vld [vmem:[#allocation5 + $0x90] sm:$0xff]
    %v100 = vld [vmem:[#allocation5 + $0x98] sm:$0xff]
    %v101 = vld [vmem:[#allocation5 + $0xa0] sm:$0xff]
    %v102 = vld [vmem:[#allocation5 + $0xa8] sm:$0xff]
    %v103 = vld [vmem:[#allocation5 + $0xb0] sm:$0xff]
    %v104 = vld [vmem:[#allocation5 + $0xb8] sm:$0xff]
    %v105 = vld [vmem:[#allocation5 + $0xc0] sm:$0xff]
    %v106 = vld [vmem:[#allocation5 + $0xc8] sm:$0xff]
    %v107 = vld [vmem:[#allocation5 + $0xd0] sm:$0xff]
    %v108 = vld [vmem:[#allocation5 + $0xd8] sm:$0xff]
    %v109 = vld [vmem:[#allocation5 + $0xe0] sm:$0xff]
    %v110 = vld [vmem:[#allocation5 + $0xe8] sm:$0xff]
    %v111 = vld [vmem:[#allocation5 + $0xf0] sm:$0xff]
    %v112 = vld [vmem:[#allocation5 + $0xf8] sm:$0xff]
    %v113 = vld [vmem:[%s2] sm:$0x3]
    %v115 = vlaneseq
    %v116 = vshrl.u32 %v115, 7
    %v117 = vsub.s32 0, %v116
    %v118 = vrot.slane %v113, %v117
    %v119 = vlaneseq
    %v120 = vshrl.u32 %v119, 7
    %v121 = vsub.s32 1, %v120
    %v122 = vrot.slane %v113, %v121
    %125 = vmatprep.subr.mxu0 %v112
    %126 = vmatpush1.msra.mxu0 %v111
    %127 = vmatprep.subr.mxu0 %v110
    %128 = vmatpush1.msra.mxu0 %v109
    %129 = vmatprep.subr.mxu0 %v108
    %130 = vmatpush1.msra.mxu0 %v107
    %131 = vmatprep.subr.mxu0 %v106
    %132 = vmatpush1.msra.mxu0 %v105
    %133 = vmatprep.subr.mxu0 %v104
    %134 = vmatpush1.msra.mxu0 %v103
    %135 = vmatprep.subr.mxu0 %v102
    %136 = vmatpush1.msra.mxu0 %v101
    %137 = vmatprep.subr.mxu0 %v100
    %138 = vmatpush1.msra.mxu0 %v99
    %139 = vmatprep.subr.mxu0 %v98
    %140 = vmatpush1.msra.mxu0 %v97
    %141 = vmatprep.subr.mxu0 %v96
    %142 = vmatpush1.msra.mxu0 %v95
    %143 = vmatprep.subr.mxu0 %v94
    %144 = vmatpush1.msra.mxu0 %v93
    %145 = vmatprep.subr.mxu0 %v92
    %146 = vmatpush1.msra.mxu0 %v91
    %147 = vmatprep.subr.mxu0 %v90
    %148 = vmatpush1.msra.mxu0 %v89
    %149 = vmatprep.subr.mxu0 %v88
    %150 = vmatpush1.msra.mxu0 %v87
    %151 = vmatprep.subr.mxu0 %v86
    %152 = vmatpush1.msra.mxu0 %v85
    %153 = vmatprep.subr.mxu0 %v84
    %154 = vmatpush1.msra.mxu0 %v83
    %155 = vmatprep.subr.mxu0 %v82
    %156 = vmatpush1.msra.mxu0 %v81
    %157 = vmatprep.subr.mxu0 0.0
    %158 = vmatpush2.msra.mxu0 0.0
    %159 = vmatprep.subr.mxu0 0.0
    %160 = vmatpush2.msra.mxu0 0.0
    %161 = vmatprep.subr.mxu0 0.0
    %162 = vmatpush2.msra.mxu0 0.0
    %163 = vmatprep.subr.mxu0 0.0
    %164 = vmatpush2.msra.mxu0 0.0
    %165 = vmatprep.subr.mxu0 0.0
    %166 = vmatpush2.msra.mxu0 0.0
    %167 = vmatprep.subr.mxu0 0.0
    %168 = vmatpush2.msra.mxu0 0.0
    %169 = vmatprep.subr.mxu0 0.0
    %170 = vmatpush2.msra.mxu0 0.0
    %171 = vmatprep.subr.mxu0 0.0
    %172 = vmatpush2.msra.mxu0 0.0
    %173 = vmatprep.subr.mxu0 0.0
    %174 = vmatpush2.msra.mxu0 0.0
    %175 = vmatprep.subr.mxu0 0.0
    %176 = vmatpush2.msra.mxu0 0.0
    %177 = vmatprep.subr.mxu0 0.0
    %178 = vmatpush2.msra.mxu0 0.0
    %179 = vmatprep.subr.mxu0 0.0
    %180 = vmatpush2.msra.mxu0 0.0
    %181 = vmatprep.subr.mxu0 0.0
    %182 = vmatpush2.msra.mxu0 0.0
    %183 = vmatprep.subr.mxu0 0.0
    %184 = vmatpush2.msra.mxu0 0.0
    %185 = vmatprep.subr.mxu0 0.0
    %186 = vmatpush2.msra.mxu0 0.0
    %187 = vmatprep.subr.mxu0 0.0
    %188 = vmatpush2.msra.mxu0 0.0
    %189 = vmatprep.mubr.f32.mxu0 0.0
    %190 = vmatmul.mubr.f32.gmra.mxu0 %v80
    %v191 = vpop.f32.mrf.mxu0
    %v192 = vadd.f32 %v118, %v191
    %v193 = vpop.f32.mrf.mxu0
    %v194 = vadd.f32 %v122, %v193
    %195 = vdwg.mxu0
    %v196 = vmax.f32 %v192, 0.0
    %v197 = vmax.f32 %v194, 0.0
    %v198 = vld [vmem:[#allocation7] sm:$0xff]
    %v199 = vld [vmem:[#allocation7 + $0x8] sm:$0xff]
    %v200 = vld [vmem:[#allocation7 + $0x10] sm:$0xff]
    %v201 = vld [vmem:[#allocation7 + $0x18] sm:$0xff]
    %v202 = vld [vmem:[#allocation7 + $0x20] sm:$0xff]
    %v203 = vld [vmem:[#allocation7 + $0x28] sm:$0xff]
    %v204 = vld [vmem:[#allocation7 + $0x30] sm:$0xff]
    %v205 = vld [vmem:[#allocation7 + $0x38] sm:$0xff]
    %v206 = vld [vmem:[#allocation7 + $0x40] sm:$0xff]
    %v207 = vld [vmem:[#allocation7 + $0x48] sm:$0xff]
    %v208 = vld [vmem:[#allocation7 + $0x50] sm:$0xff]
    %v209 = vld [vmem:[#allocation7 + $0x58] sm:$0xff]
    %v210 = vld [vmem:[#allocation7 + $0x60] sm:$0xff]
    %v211 = vld [vmem:[#allocation7 + $0x68] sm:$0xff]
    %v212 = vld [vmem:[#allocation7 + $0x70] sm:$0xff]
    %v213 = vld [vmem:[#allocation7 + $0x78] sm:$0xff]
    %v214 = vld [vmem:[#allocation7 + $0x80] sm:$0xff]
    %v215 = vld [vmem:[#allocation7 + $0x88] sm:$0xff]
    %v216 = vld [vmem:[#allocation7 + $0x90] sm:$0xff]
    %v217 = vld [vmem:[#allocation7 + $0x98] sm:$0xff]
    %v218 = vld [vmem:[#allocation7 + $0xa0] sm:$0xff]
    %v219 = vld [vmem:[#allocation7 + $0xa8] sm:$0xff]
    %v220 = vld [vmem:[#allocation7 + $0xb0] sm:$0xff]
    %v221 = vld [vmem:[#allocation7 + $0xb8] sm:$0xff]
    %v222 = vld [vmem:[#allocation7 + $0xc0] sm:$0xff]
    %v223 = vld [vmem:[#allocation7 + $0xc8] sm:$0xff]
    %v224 = vld [vmem:[#allocation7 + $0xd0] sm:$0xff]
    %v225 = vld [vmem:[#allocation7 + $0xd8] sm:$0xff]
    %v226 = vld [vmem:[#allocation7 + $0xe0] sm:$0xff]
    %v227 = vld [vmem:[#allocation7 + $0xe8] sm:$0xff]
    %v228 = vld [vmem:[#allocation7 + $0xf0] sm:$0xff]
    %v229 = vld [vmem:[#allocation7 + $0xf8] sm:$0xff]
    %v230 = vld [vmem:[%s4] sm:$0x1]
    %v232 = vlaneseq
    %v233 = vshrl.u32 %v232, 7
    %v234 = vsub.s32 0, %v233
    %v235 = vrot.slane %v230, %v234
    %237 = vmatprep.subr.mxu0 0.0
    %238 = vmatpush1.msra.mxu0 %v213
    %239 = vmatprep.subr.mxu0 0.0
    %240 = vmatpush1.msra.mxu0 %v212
    %241 = vmatprep.subr.mxu0 0.0
    %242 = vmatpush1.msra.mxu0 %v211
    %243 = vmatprep.subr.mxu0 0.0
    %244 = vmatpush1.msra.mxu0 %v210
    %245 = vmatprep.subr.mxu0 0.0
    %246 = vmatpush1.msra.mxu0 %v209
    %247 = vmatprep.subr.mxu0 0.0
    %248 = vmatpush1.msra.mxu0 %v208
    %249 = vmatprep.subr.mxu0 0.0
    %250 = vmatpush1.msra.mxu0 %v207
    %251 = vmatprep.subr.mxu0 0.0
    %252 = vmatpush1.msra.mxu0 %v206
    %253 = vmatprep.subr.mxu0 0.0
    %254 = vmatpush1.msra.mxu0 %v205
    %255 = vmatprep.subr.mxu0 0.0
    %256 = vmatpush1.msra.mxu0 %v204
    %257 = vmatprep.subr.mxu0 0.0
    %258 = vmatpush1.msra.mxu0 %v203
    %259 = vmatprep.subr.mxu0 0.0
    %260 = vmatpush1.msra.mxu0 %v202
    %261 = vmatprep.subr.mxu0 0.0
    %262 = vmatpush1.msra.mxu0 %v201
    %263 = vmatprep.subr.mxu0 0.0
    %264 = vmatpush1.msra.mxu0 %v200
    %265 = vmatprep.subr.mxu0 0.0
    %266 = vmatpush1.msra.mxu0 %v199
    %267 = vmatprep.subr.mxu0 0.0
    %268 = vmatpush1.msra.mxu0 %v198
    %269 = vmatprep.subr.mxu0 0.0
    %270 = vmatpush2.msra.mxu0 %v229
    %271 = vmatprep.subr.mxu0 0.0
    %272 = vmatpush2.msra.mxu0 %v228
    %273 = vmatprep.subr.mxu0 0.0
    %274 = vmatpush2.msra.mxu0 %v227
    %275 = vmatprep.subr.mxu0 0.0
    %276 = vmatpush2.msra.mxu0 %v226
    %277 = vmatprep.subr.mxu0 0.0
    %278 = vmatpush2.msra.mxu0 %v225
    %279 = vmatprep.subr.mxu0 0.0
    %280 = vmatpush2.msra.mxu0 %v224
    %281 = vmatprep.subr.mxu0 0.0
    %282 = vmatpush2.msra.mxu0 %v223
    %283 = vmatprep.subr.mxu0 0.0
    %284 = vmatpush2.msra.mxu0 %v222
    %285 = vmatprep.subr.mxu0 0.0
    %286 = vmatpush2.msra.mxu0 %v221
    %287 = vmatprep.subr.mxu0 0.0
    %288 = vmatpush2.msra.mxu0 %v220
    %289 = vmatprep.subr.mxu0 0.0
    %290 = vmatpush2.msra.mxu0 %v219
    %291 = vmatprep.subr.mxu0 0.0
    %292 = vmatpush2.msra.mxu0 %v218
    %293 = vmatprep.subr.mxu0 0.0
    %294 = vmatpush2.msra.mxu0 %v217
    %295 = vmatprep.subr.mxu0 0.0
    %296 = vmatpush2.msra.mxu0 %v216
    %297 = vmatprep.subr.mxu0 0.0
    %298 = vmatpush2.msra.mxu0 %v215
    %299 = vmatprep.subr.mxu0 0.0
    %300 = vmatpush2.msra.mxu0 %v214
    %301 = vmatprep.mubr.f32.mxu0 %v197
    %302 = vmatmul.mubr.f32.gmra.mxu0 %v196
    %v303 = vpop.f32.mrf.mxu0
    %v304 = vadd.f32 %v235, %v303
    %v305 = vpop.f32.mrf.mxu0
    %306 = vdwg.mxu0
    %v307 = vmax.f32 %v304, 0.0
    %v308 = vld [vmem:[#allocation8] sm:$0xff]
    %v309 = vld [vmem:[#allocation8 + $0x8] sm:$0xff]
    %v310 = vld [vmem:[#allocation8 + $0x10] sm:$0xff]
    %v311 = vld [vmem:[#allocation8 + $0x18] sm:$0xff]
    %v312 = vld [vmem:[#allocation8 + $0x20] sm:$0xff]
    %v313 = vld [vmem:[#allocation8 + $0x28] sm:$0xff]
    %v314 = vld [vmem:[#allocation8 + $0x30] sm:$0xff]
    %v315 = vld [vmem:[#allocation8 + $0x38] sm:$0xff]
    %v316 = vld [vmem:[#allocation8 + $0x40] sm:$0xff]
    %v317 = vld [vmem:[#allocation8 + $0x48] sm:$0xff]
    %v318 = vld [vmem:[#allocation8 + $0x50] sm:$0xff]
    %v319 = vld [vmem:[#allocation8 + $0x58] sm:$0xff]
    %v320 = vld [vmem:[#allocation8 + $0x60] sm:$0xff]
    %v321 = vld [vmem:[#allocation8 + $0x68] sm:$0xff]
    %v322 = vld [vmem:[#allocation8 + $0x70] sm:$0xff]
    %v323 = vld [vmem:[#allocation8 + $0x78] sm:$0xff]
    %v324 = vld [vmem:[%s6] sm:$0x1]
    %v326 = vlaneseq
    %v327 = vshrl.u32 %v326, 7
    %v328 = vsub.s32 0, %v327
    %v329 = vrot.slane %v324, %v328
    %331 = vmatprep.subr.mxu0 0.0
    %332 = vmatpush1.msra.mxu0 %v323
    %333 = vmatprep.subr.mxu0 0.0
    %334 = vmatpush1.msra.mxu0 %v322
    %335 = vmatprep.subr.mxu0 0.0
    %336 = vmatpush1.msra.mxu0 %v321
    %337 = vmatprep.subr.mxu0 0.0
    %338 = vmatpush1.msra.mxu0 %v320
    %339 = vmatprep.subr.mxu0 0.0
    %340 = vmatpush1.msra.mxu0 %v319
    %341 = vmatprep.subr.mxu0 0.0
    %342 = vmatpush1.msra.mxu0 %v318
    %343 = vmatprep.subr.mxu0 0.0
    %344 = vmatpush1.msra.mxu0 %v317
    %345 = vmatprep.subr.mxu0 0.0
    %346 = vmatpush1.msra.mxu0 %v316
    %347 = vmatprep.subr.mxu0 0.0
    %348 = vmatpush1.msra.mxu0 %v315
    %349 = vmatprep.subr.mxu0 0.0
    %350 = vmatpush1.msra.mxu0 %v314
    %351 = vmatprep.subr.mxu0 0.0
    %352 = vmatpush1.msra.mxu0 %v313
    %353 = vmatprep.subr.mxu0 0.0
    %354 = vmatpush1.msra.mxu0 %v312
    %355 = vmatprep.subr.mxu0 0.0
    %356 = vmatpush1.msra.mxu0 %v311
    %357 = vmatprep.subr.mxu0 0.0
    %358 = vmatpush1.msra.mxu0 %v310
    %359 = vmatprep.subr.mxu0 0.0
    %360 = vmatpush1.msra.mxu0 %v309
    %361 = vmatprep.subr.mxu0 0.0
    %362 = vmatpush1.msra.mxu0 %v308
    %363 = vmatprep.subr.mxu0 0.0
    %364 = vmatpush2.msra.mxu0 0.0
    %365 = vmatprep.subr.mxu0 0.0
    %366 = vmatpush2.msra.mxu0 0.0
    %367 = vmatprep.subr.mxu0 0.0
    %368 = vmatpush2.msra.mxu0 0.0
    %369 = vmatprep.subr.mxu0 0.0
    %370 = vmatpush2.msra.mxu0 0.0
    %371 = vmatprep.subr.mxu0 0.0
    %372 = vmatpush2.msra.mxu0 0.0
    %373 = vmatprep.subr.mxu0 0.0
    %374 = vmatpush2.msra.mxu0 0.0
    %375 = vmatprep.subr.mxu0 0.0
    %376 = vmatpush2.msra.mxu0 0.0
    %377 = vmatprep.subr.mxu0 0.0
    %378 = vmatpush2.msra.mxu0 0.0
    %379 = vmatprep.subr.mxu0 0.0
    %380 = vmatpush2.msra.mxu0 0.0
    %381 = vmatprep.subr.mxu0 0.0
    %382 = vmatpush2.msra.mxu0 0.0
    %383 = vmatprep.subr.mxu0 0.0
    %384 = vmatpush2.msra.mxu0 0.0
    %385 = vmatprep.subr.mxu0 0.0
    %386 = vmatpush2.msra.mxu0 0.0
    %387 = vmatprep.subr.mxu0 0.0
    %388 = vmatpush2.msra.mxu0 0.0
    %389 = vmatprep.subr.mxu0 0.0
    %390 = vmatpush2.msra.mxu0 0.0
    %391 = vmatprep.subr.mxu0 0.0
    %392 = vmatpush2.msra.mxu0 0.0
    %393 = vmatprep.subr.mxu0 0.0
    %394 = vmatpush2.msra.mxu0 0.0
    %395 = vmatprep.mubr.f32.mxu0 0.0
    %396 = vmatmul.mubr.f32.gmra.mxu0 %v307
    %v397 = vpop.f32.mrf.mxu0
    %v398 = vadd.f32 %v329, %v397
    %v399 = vpop.f32.mrf.mxu0
    %400 = vdwg.mxu0
    %v401 = vtanh.pop %v398
    %402 = vst [vmem:[#allocation10] sm:$0xff] %v401
    // Predicated region
    $region46: #{tpu_custom_call.1} parent=1 // pred_check
      _
    $region47: #{tpu_custom_call.1} parent=1 // pred_check_branch
      %404 = sbr.rel (0) target = $region49
    $region48: #{tpu_custom_call.1} parent=1 // pred_region
      %s406 = ssub.s32 128, 128
      %407 = vsyncadd [#allocation4], %s406
      %s409 = sshll.u32 [#allocation10], 4
      %s410 = int_to_ptr.vmem [resolvable:$true] %s409
      %412 = dma.vmem_to_hbm [thread:$0]  %s410, 128, %s7, [#allocation4]
    $region49: #{tpu_custom_call.1} parent=1 // pred_fallthru
      _
    // Predicated region
    $region50: #{tpu_custom_call.1} parent=1 // pred_check
      _
    $region51: #{tpu_custom_call.1} parent=1 // pred_check_branch
      %414 = sbr.rel (0) target = $region53
    $region52: #{tpu_custom_call.1} parent=1 // pred_region
      %415 = dma.done [#allocation4], 128
    $region53: #{tpu_custom_call.1} parent=1 // pred_fallthru
      _
    %416 = vsyncpa [#allocation3], 1
    %417 = vsyncpa [#allocation6], 1
    %418 = vsyncpa [#allocation9], 1
    %419 = vsyncpa [#allocation4], 1

</llo_original>
